<compile_context>
chip_gen: v7x
topology: tpu7x:2x2x1
jax: 0.10.0
libtpu: 0.0.40
codegen_flags: <defaults>
</compile_context>

<pallas_src>
import functools

import jax
import jax.numpy as jnp
from jax.experimental import pallas as pl
from jax.experimental.pallas import tpu as pltpu


def _feat_classifier_kernel(x_ref, w1t_ref, b1_ref, w2_ref, b2_ref,
                            feat_ref, logits_ref, pooled_ref,
                            *, inv_hw, compute_dtype):
    # x_ref      : (1, C_in, tile_hw)   channel-major input tile
    # w1t_ref    : (C_mid, C_in)        backbone 1x1-conv weight, transposed
    # b1_ref     : (C_mid, 1)
    # w2_ref     : (C_mid, n_attr)      classifier linear weight
    # b2_ref     : (1, n_attr)
    # feat_ref   : (1, C_mid, tile_hw)  backbone feature tile (lane-dense store)
    # logits_ref : (1, 1, n_attr)       written once, on the last HW tile
    # pooled_ref : (C_mid, 1) f32       per-channel spatial-sum accumulator
    t = pl.program_id(1)

    @pl.when(t == 0)
    def _():
        pooled_ref[...] = jnp.zeros_like(pooled_ref)

    # backbone 1x1 conv in channel-major layout: (C_mid, C_in) @ (C_in, tile_hw)
    x = x_ref[0].astype(compute_dtype)
    w1t = w1t_ref[...].astype(compute_dtype)
    h = jnp.dot(w1t, x, preferred_element_type=jnp.float32)    # (C_mid, tile_hw)
    h = jnp.maximum(h + b1_ref[...], 0.0)                      # bias + ReLU (f32 VPU)
    feat_ref[0] = h.astype(feat_ref.dtype)

    # accumulate spatial sum for global average pooling (f32 accumulator; the
    # cross-lane reduce rides the XLU slot, free under the memory-bound loop)
    pooled_ref[...] += jnp.sum(h, axis=1, keepdims=True)       # (C_mid, 1)

    @pl.when(t == pl.num_programs(1) - 1)
    def _():
        # mean via one multiply; classifier linear (M=1) on the VPU:
        # broadcast-multiply + reduce instead of an MXU pass.
        pooled = pooled_ref[...] * inv_hw                       # (C_mid, 1)
        logits = jnp.sum(pooled * w2_ref[...], axis=0, keepdims=True) + b2_ref[...]
        logits_ref[0] = logits.astype(logits_ref.dtype)         # (1, n_attr)


def _choose_tile_hw(HW, C_in, C_mid, feat_itemsize, budget_bytes=12 << 20):
    """Largest HW tile (multiple of 128, dividing HW) whose double-buffered
    (input + feat) footprint stays within `budget_bytes` (v7x 64 MiB safe)."""
    if HW % 128 != 0:
        return HW  # full-extent block is always legal
    per_col_bytes = C_in * 4 + C_mid * feat_itemsize
    max_tile = max(128, budget_bytes // (2 * per_col_bytes))
    best = 128
    t = 128
    while t <= HW:
        if HW % t == 0 and t <= max_tile:
            best = t
        t += 128
    return best


def feat_classifier_forward(x_nchw, w1, b1, w2, b2, *,
                            tile_hw=None,
                            compute_dtype=jnp.float32,
                            feat_dtype=None):
    """x_nchw: (B, C_in, H, W).  Returns (logits (B, n_attr),
    feat_map (B, C_mid, H, W)) — same semantics as FeatClassifier.forward.

    For production: compute_dtype=jnp.bfloat16 (MXU-native on v5e/v6e/v7x) and
    feat_dtype=jnp.bfloat16 halve the dominant HBM writeback if downstream allows.
    """
    B, C_in, H, W = x_nchw.shape
    HW = H * W
    C_mid = w1.shape[1]
    n_attr = w2.shape[1]
    feat_dtype = feat_dtype or x_nchw.dtype
    feat_itemsize = jnp.dtype(feat_dtype).itemsize

    # Channel-major: NCHW -> (B, C_in, HW) is a pure reshape (no transpose),
    # and the feature output (B, C_mid, HW) reshapes straight back to NCHW.
    x_flat = x_nchw.reshape(B, C_in, HW)
    w1t = jnp.transpose(w1)            # (C_mid, C_in), tiny one-time op
    b1_col = b1.reshape(C_mid, 1)
    b2_row = b2.reshape(1, n_attr)

    if tile_hw is None:
        tile_hw = _choose_tile_hw(HW, C_in, C_mid, feat_itemsize)
    if HW % tile_hw != 0:
        raise ValueError(f"tile_hw={tile_hw} must divide HW={HW}")
    if tile_hw != HW and tile_hw % 128 != 0:
        raise ValueError("tile_hw must be a multiple of 128 (or equal HW)")
    n_hw_tiles = HW // tile_hw

    # Explicit VMEM budget: double-buffered input + feat tiles, weights, and a
    # little slack.  Stays under the 32 MiB scoped default and well inside
    # v7x's 64 MiB physical VMEM.
    tile_bytes = tile_hw * (C_in * 4 + C_mid * feat_itemsize)
    weight_bytes = (C_mid * C_in + C_mid + C_mid * n_attr + n_attr) * 4
    vmem_limit_bytes = int(min(32 << 20,
                               max(8 << 20,
                                   2 * tile_bytes + 2 * weight_bytes + (2 << 20))))

    kernel = functools.partial(_feat_classifier_kernel,
                               inv_hw=1.0 / float(HW),
                               compute_dtype=compute_dtype)

    grid_spec = pltpu.PrefetchScalarGridSpec(
        num_scalar_prefetch=0,
        grid=(B, n_hw_tiles),          # reduction (HW) axis last
        in_specs=[
            pl.BlockSpec((1, C_in, tile_hw), lambda b, t: (b, 0, t)),
            pl.BlockSpec((C_mid, C_in), lambda b, t: (0, 0)),
            pl.BlockSpec((C_mid, 1), lambda b, t: (0, 0)),
            pl.BlockSpec((C_mid, n_attr), lambda b, t: (0, 0)),
            pl.BlockSpec((1, n_attr), lambda b, t: (0, 0)),
        ],
        out_specs=[
            pl.BlockSpec((1, C_mid, tile_hw), lambda b, t: (b, 0, t)),
            pl.BlockSpec((1, 1, n_attr), lambda b, t: (b, 0, 0)),  # resident across t
        ],
        scratch_shapes=[pltpu.VMEM((C_mid, 1), jnp.float32)],
    )

    cost = pl.CostEstimate(
        flops=2 * B * HW * C_in * C_mid + 2 * B * C_mid * n_attr,
        transcendentals=0,
        bytes_accessed=(x_flat.size * 4 + B * C_mid * HW * feat_itemsize
                        + weight_bytes + B * n_attr * 4),
    )

    feat_flat, logits3 = pl.pallas_call(
        kernel,
        out_shape=(
            jax.ShapeDtypeStruct((B, C_mid, HW), feat_dtype),
            jax.ShapeDtypeStruct((B, 1, n_attr), jnp.float32),
        ),
        grid_spec=grid_spec,
        compiler_params=pltpu.CompilerParams(
            dimension_semantics=("parallel", "arbitrary"),
            vmem_limit_bytes=vmem_limit_bytes,
        ),
        cost_estimate=cost,
    )(x_flat, w1t, b1_col, w2, b2_row)

    logits = logits3.reshape(B, n_attr)
    feat_map = feat_flat.reshape(B, C_mid, H, W)   # already NCHW-ordered
    return logits, feat_map


def _reference_forward(x_nchw, w1, b1, w2, b2):
    B, C_in, H, W = x_nchw.shape
    x_flat = jnp.transpose(x_nchw, (0, 2, 3, 1)).reshape(B, H * W, C_in)
    h = jnp.maximum(jnp.einsum("bsc,cd->bsd", x_flat, w1) + b1, 0.0)
    pooled = jnp.mean(h, axis=1)
    logits = pooled @ w2 + b2
    feat = jnp.transpose(h.reshape(B, H, W, -1), (0, 3, 1, 2))
    return logits, feat


if __name__ == "__main__":
    # Small deterministic shapes: batch=2, C_in=4, spatial=16x16,
    # backbone channels C_mid=32, n_attr=8 classifier outputs.
    B, C_in, H, W = 2, 4, 16, 16
    C_mid, n_attr = 32, 8

    key = jax.random.PRNGKey(0)
    kx, kw1, kb1, kw2, kb2 = jax.random.split(key, 5)
    x = jax.random.normal(kx, (B, C_in, H, W), dtype=jnp.float32)
    w1 = jax.random.normal(kw1, (C_in, C_mid), dtype=jnp.float32) * (1.0 / jnp.sqrt(C_in))
    b1 = jax.random.normal(kb1, (C_mid,), dtype=jnp.float32) * 0.01
    w2 = jax.random.normal(kw2, (C_mid, n_attr), dtype=jnp.float32) * (1.0 / jnp.sqrt(C_mid))
    b2 = jax.random.normal(kb2, (n_attr,), dtype=jnp.float32) * 0.01

    ref_logits, ref_feat = _reference_forward(x, w1, b1, w2, b2)

    # 1) multi-tile HW path (exercises init / accumulate / pl.when finalize):
    logits_a, feat_a = feat_classifier_forward(x, w1, b1, w2, b2, tile_hw=128)
    # 2) auto-chosen tile (single HW tile at these shapes):
    logits_b, feat_b = feat_classifier_forward(x, w1, b1, w2, b2)
    jax.block_until_ready((logits_a, feat_a, logits_b, feat_b))

    for logits, feat in ((logits_a, feat_a), (logits_b, feat_b)):
        assert logits.shape == (B, n_attr)
        assert feat.shape == (B, C_mid, H, W)
        assert jnp.allclose(logits, ref_logits, atol=1e-4, rtol=1e-4)
        assert jnp.allclose(feat, ref_feat, atol=1e-4, rtol=1e-4)

    # TODO(synk): the ONNX-export branch (logits[0].sigmoid()) is a trace-time
    # PyTorch condition with no runtime equivalent here; regular path implemented.
    print("KERNEL_OK")
</pallas_src>

<mosaic_0001>
module attributes {stable_mosaic.version = 11 : i64} {
  func.func @_feat_classifier_kernel(%arg0: i32, %arg1: i32, %arg2: memref<1x4x128xf32, #tpu.memory_space<vmem>>, %arg3: memref<32x4xf32, #tpu.memory_space<vmem>>, %arg4: memref<32x1xf32, #tpu.memory_space<vmem>>, %arg5: memref<32x8xf32, #tpu.memory_space<vmem>>, %arg6: memref<1x8xf32, #tpu.memory_space<vmem>>, %arg7: memref<1x32x128xf32, #tpu.memory_space<vmem>>, %arg8: memref<1x1x8xf32, #tpu.memory_space<vmem>>, %arg9: memref<32x1xf32, #tpu.memory_space<vmem>>) attributes {dimension_semantics = [#tpu.dimension_semantics<parallel>, #tpu.dimension_semantics<arbitrary>], iteration_bounds = array<i64: 2, 2>, scalar_prefetch = 0 : i64, scratch_operands = 1 : i64, tpu.core_type = #tpu.core_type<tc>, window_params = [{transform_indices = @transform_0, window_bounds = array<i64: 1, 4, 128>}, {pipeline_mode = #tpu.pipeline_mode<synchronous>, transform_indices = @transform_1, window_bounds = array<i64: 32, 4>}, {pipeline_mode = #tpu.pipeline_mode<synchronous>, transform_indices = @transform_2, window_bounds = array<i64: 32, 1>}, {pipeline_mode = #tpu.pipeline_mode<synchronous>, transform_indices = @transform_3, window_bounds = array<i64: 32, 8>}, {pipeline_mode = #tpu.pipeline_mode<synchronous>, transform_indices = @transform_4, window_bounds = array<i64: 1, 8>}, {transform_indices = @transform_5, window_bounds = array<i64: 1, 32, 128>}, {transform_indices = @transform_6, window_bounds = array<i64: 1, 1, 8>}]} {
    %c0_i32 = arith.constant 0 : i32
    %0 = arith.cmpi eq, %arg1, %c0_i32 : i32
    %1 = arith.extui %0 : i1 to i32
    %c0_i32_0 = arith.constant 0 : i32
    %2 = arith.cmpi ne, %1, %c0_i32_0 : i32
    scf.if %2 {
      %cst_17 = arith.constant 0.000000e+00 : f32
      %23 = vector.broadcast %cst_17 : f32 to vector<32x1xf32>
      %c0_18 = arith.constant 0 : index
      %c0_19 = arith.constant 0 : index
      %24 = vector.load %arg9[%c0_18, %c0_19] : memref<32x1xf32, #tpu.memory_space<vmem>>, vector<32x1xf32>
      tpu.vector_store %arg9[%c0_18, %c0_19], %23 {strides = array<i32>} : memref<32x1xf32, #tpu.memory_space<vmem>>, vector<32x1xf32>,
    } else {
    }
    %c0 = arith.constant 0 : index
    %c0_1 = arith.constant 0 : index
    %c0_2 = arith.constant 0 : index
    %3 = vector.load %arg2[%c0, %c0_1, %c0_2] : memref<1x4x128xf32, #tpu.memory_space<vmem>>, vector<1x4x128xf32>
    %4 = vector.shape_cast %3 : vector<1x4x128xf32> to vector<4x128xf32>
    %c0_3 = arith.constant 0 : index
    %c0_4 = arith.constant 0 : index
    %5 = vector.load %arg3[%c0_3, %c0_4] : memref<32x4xf32, #tpu.memory_space<vmem>>, vector<32x4xf32>
    %cst = arith.constant dense<0.000000e+00> : vector<32x128xf32>
    %6 = tpu.matmul %5, %4, %cst {dimension_numbers = #tpu.dot_dimension_numbers<[1], [0], [0], [1], [0, 0, 1, 1], [], []>} : vector<32x4xf32>, vector<4x128xf32>, vector<32x128xf32> -> vector<32x128xf32>
    %c0_5 = arith.constant 0 : index
    %c0_6 = arith.constant 0 : index
    %7 = vector.load %arg4[%c0_5, %c0_6] : memref<32x1xf32, #tpu.memory_space<vmem>>, vector<32x1xf32>
    %8 = vector.broadcast %7 : vector<32x1xf32> to vector<32x128xf32>
    %9 = arith.addf %6, %8 : vector<32x128xf32>
    %cst_7 = arith.constant 0.000000e+00 : f32
    %10 = vector.broadcast %cst_7 : f32 to vector<32x128xf32>
    %11 = arith.maximumf %9, %10 : vector<32x128xf32>
    %c0_8 = arith.constant 0 : index
    %c0_9 = arith.constant 0 : index
    %c0_10 = arith.constant 0 : index
    %12 = vector.load %arg7[%c0_8, %c0_9, %c0_10] : memref<1x32x128xf32, #tpu.memory_space<vmem>>, vector<1x32x128xf32>
    %13 = vector.shape_cast %12 : vector<1x32x128xf32> to vector<32x128xf32>
    %14 = vector.shape_cast %11 : vector<32x128xf32> to vector<1x32x128xf32>
    tpu.vector_store %arg7[%c0_8, %c0_9, %c0_10], %14 {strides = array<i32>} : memref<1x32x128xf32, #tpu.memory_space<vmem>>, vector<1x32x128xf32>,
    %c0_11 = arith.constant 0 : index
    %c0_12 = arith.constant 0 : index
    %15 = vector.load %arg9[%c0_11, %c0_12] : memref<32x1xf32, #tpu.memory_space<vmem>>, vector<32x1xf32>
    %cst_13 = arith.constant dense<0.000000e+00> : vector<32xf32>
    %16 = vector.multi_reduction <add>, %11, %cst_13 [1] : vector<32x128xf32> to vector<32xf32>
    %17 = vector.shape_cast %16 : vector<32xf32> to vector<32x1xf32>
    %18 = arith.addf %15, %17 : vector<32x1xf32>
    %c0_14 = arith.constant 0 : index
    %c0_15 = arith.constant 0 : index
    %19 = vector.load %arg9[%c0_14, %c0_15] : memref<32x1xf32, #tpu.memory_space<vmem>>, vector<32x1xf32>
    tpu.vector_store %arg9[%c0_14, %c0_15], %18 {strides = array<i32>} : memref<32x1xf32, #tpu.memory_space<vmem>>, vector<32x1xf32>,
    %c1_i32 = arith.constant 1 : i32
    %20 = arith.cmpi eq, %arg1, %c1_i32 : i32
    %21 = arith.extui %20 : i1 to i32
    %c0_i32_16 = arith.constant 0 : i32
    %22 = arith.cmpi ne, %21, %c0_i32_16 : i32
    scf.if %22 {
      %c0_17 = arith.constant 0 : index
      %c0_18 = arith.constant 0 : index
      %23 = vector.load %arg9[%c0_17, %c0_18] : memref<32x1xf32, #tpu.memory_space<vmem>>, vector<32x1xf32>
      %cst_19 = arith.constant 3.906250e-03 : f32
      %24 = vector.broadcast %cst_19 : f32 to vector<32x1xf32>
      %25 = arith.mulf %23, %24 : vector<32x1xf32>
      %c0_20 = arith.constant 0 : index
      %c0_21 = arith.constant 0 : index
      %26 = vector.load %arg5[%c0_20, %c0_21] : memref<32x8xf32, #tpu.memory_space<vmem>>, vector<32x8xf32>
      %27 = vector.broadcast %25 : vector<32x1xf32> to vector<32x8xf32>
      %28 = arith.mulf %27, %26 : vector<32x8xf32>
      %cst_22 = arith.constant dense<0.000000e+00> : vector<8xf32>
      %29 = vector.multi_reduction <add>, %28, %cst_22 [0] : vector<32x8xf32> to vector<8xf32>
      %30 = vector.shape_cast %29 : vector<8xf32> to vector<1x8xf32>
      %c0_23 = arith.constant 0 : index
      %c0_24 = arith.constant 0 : index
      %31 = vector.load %arg6[%c0_23, %c0_24] : memref<1x8xf32, #tpu.memory_space<vmem>>, vector<1x8xf32>
      %32 = arith.addf %30, %31 : vector<1x8xf32>
      %c0_25 = arith.constant 0 : index
      %c0_26 = arith.constant 0 : index
      %c0_27 = arith.constant 0 : index
      %33 = vector.load %arg8[%c0_25, %c0_26, %c0_27] : memref<1x1x8xf32, #tpu.memory_space<vmem>>, vector<1x1x8xf32>
      %34 = vector.shape_cast %33 : vector<1x1x8xf32> to vector<1x8xf32>
      %35 = vector.shape_cast %32 : vector<1x8xf32> to vector<1x1x8xf32>
      tpu.vector_store %arg8[%c0_25, %c0_26, %c0_27], %35 {strides = array<i32>} : memref<1x1x8xf32, #tpu.memory_space<vmem>>, vector<1x1x8xf32>,
    } else {
    }
    return
  }
  func.func @transform_0(%arg0: i32, %arg1: i32) -> (i32, i32, i32) {
    %c0_i32 = arith.constant 0 : i32
    %c0_i32_0 = arith.constant 0 : i32
    return %arg0, %c0_i32, %arg1 : i32, i32, i32
  }
  func.func @transform_1(%arg0: i32, %arg1: i32) -> (i32, i32) {
    %c0_i32 = arith.constant 0 : i32
    %c0_i32_0 = arith.constant 0 : i32
    %c0_i32_1 = arith.constant 0 : i32
    return %c0_i32, %c0_i32_0 : i32, i32
  }
  func.func @transform_2(%arg0: i32, %arg1: i32) -> (i32, i32) {
    %c0_i32 = arith.constant 0 : i32
    %c0_i32_0 = arith.constant 0 : i32
    %c0_i32_1 = arith.constant 0 : i32
    return %c0_i32, %c0_i32_0 : i32, i32
  }
  func.func @transform_3(%arg0: i32, %arg1: i32) -> (i32, i32) {
    %c0_i32 = arith.constant 0 : i32
    %c0_i32_0 = arith.constant 0 : i32
    %c0_i32_1 = arith.constant 0 : i32
    return %c0_i32, %c0_i32_0 : i32, i32
  }
  func.func @transform_4(%arg0: i32, %arg1: i32) -> (i32, i32) {
    %c0_i32 = arith.constant 0 : i32
    %c0_i32_0 = arith.constant 0 : i32
    %c0_i32_1 = arith.constant 0 : i32
    return %c0_i32, %c0_i32_0 : i32, i32
  }
  func.func @transform_5(%arg0: i32, %arg1: i32) -> (i32, i32, i32) {
    %c0_i32 = arith.constant 0 : i32
    %c0_i32_0 = arith.constant 0 : i32
    return %arg0, %c0_i32, %arg1 : i32, i32, i32
  }
  func.func @transform_6(%arg0: i32, %arg1: i32) -> (i32, i32, i32) {
    %c0_i32 = arith.constant 0 : i32
    %c0_i32_0 = arith.constant 0 : i32
    %c0_i32_1 = arith.constant 0 : i32
    return %arg0, %c0_i32, %c0_i32_0 : i32, i32, i32
  }
}

</mosaic_0001>

<llo_original>
// kernel: tpu_custom_call.1
$region0: #{tpu_custom_call.1}
  #allocation0 [shape = 'u32[]', space=smem, size = 0x4, offset = 0x4, fixed_abs, tag = 'smem constant byte address 0x4 - core index']
  #allocation1 [shape = 'u32[144,128]{1,0:T(1,128)}', space=vmem, size = 0x12000, scoped, tag = 'internal scratch']
  #allocation2 [shape = 'f32[32,1]{1,0:T(8,128)}', space=vmem, size = 0x4000, scoped, tag = 'scratch operand']
  %s0 = inlined_call_operand.vmem [shape: f32[2,4,256], index: 0, kind: input, shape index: {}]
  %s1 = inlined_call_operand.vmem [shape: f32[32,4], index: 1, kind: input, shape index: {}]
  %s2 = inlined_call_operand.vmem [shape: f32[32,1], index: 2, kind: input, shape index: {}]
  %s3 = inlined_call_operand.vmem [shape: f32[32,8], index: 3, kind: input, shape index: {}]
  %s4 = inlined_call_operand.vmem [shape: f32[1,8], index: 4, kind: input, shape index: {}]
  %s5 = inlined_call_operand.hbm [shape: f32[2,32,256], index: 5, kind: output, shape index: {0}]
  %s6 = inlined_call_operand.hbm [shape: f32[2,1,8], index: 6, kind: output, shape index: {1}]
  %7 = xla_tuple %s5, %s6
  %s8 = sld [smem:[#allocation0]]
  $region69: #{tpu_custom_call.1} parent=0
    _
  %s10 = ssub.s32 1, %s8
  %s11 = scalar_select 0, %s10, %s8
  $region1: #{tpu_custom_call.1} parent=0
    #allocation3 [shape = 'u8[32768]{0}', space=vmem, size = 0x8000, scoped, tag = 'output window, operand 0']
    #allocation4 [shape = 's32[2]{0}', space=sflag, size = 0x8, scoped, tag = 'scoped memory for tpu_custom_call.1']
    #allocation5 [shape = 'u8[1024]{0}', space=vmem, size = 0x400, scoped, tag = 'output window, operand 1']
    #allocation6 [shape = 's32[2]{0}', space=sflag, size = 0x8, scoped, tag = 'scoped memory for tpu_custom_call.1']
    %12 = vsyncpa [#allocation4], 0
    %s13 = scalar_lea.sflag [#allocation4], 1
    %14 = vsyncpa %s13, 0
    %15 = vsyncpa [#allocation6], 0
    %s16 = scalar_lea.sflag [#allocation6], 1
    %17 = vsyncpa %s16, 0
    loop: start=0, step=1, limit=6
    $region2: #{tpu_custom_call.1} parent=1 // loop_pre_header
      _
    $region3: #{tpu_custom_call.1} parent=1 // loop_header
      %s19 = sphi 0, %s23
      %p20 = scmp.ge.s32.totalorder %s19, 6
      %s26 = sphi 0, %s38
      %s27 = sphi 0, %s34
      %s28 = sphi 0, %s26
      %s29 = sphi 0, %s27
      %s30 = sphi 0, %s28
      %s31 = sphi 0, %s29
      %s43 = sphi 0, %s45
      %s46 = sphi 0, %s43
      %s47 = sphi 0, %s46
      %s63 = sphi 0, %s47
      %s67 = sphi 0, %s67
      %s69 = sphi 0, %s67
      %s70 = sphi 0, %s69
      %s84 = sphi 0, %s70
      %s88 = sphi 0, %s88
      %s90 = sphi 0, %s88
      %s91 = sphi 0, %s90
      %s105 = sphi 0, %s91
      %s109 = sphi 0, %s109
      %s111 = sphi 0, %s109
      %s112 = sphi 0, %s111
      %s126 = sphi 0, %s112
      %s130 = sphi 0, %s130
      %s132 = sphi 0, %s130
      %s133 = sphi 0, %s132
      %s147 = sphi 0, %s133
      %s155 = sphi 0, %s157
      %s158 = sphi 0, %s155
      %s159 = sphi 0, %s158
      %s175 = sphi 0, %s159
      %s181 = sphi 0, %s183
      %s184 = sphi 0, %s181
      %s185 = sphi 0, %s184
      %s201 = sphi 0, %s185
    $region4: #{tpu_custom_call.1} parent=1 // loop_header_branch
      %22 = sbr.rel (%p20) target = $region8
    $region5: #{tpu_custom_call.1} parent=1 // loop_body
      %s24 = ssub.s32 %s19, 1
      %s25 = ssub.s32 %s19, 2
      %s32 = sadd.s32 1, %s27
      %p33 = scmp.ge.s32.totalorder %s32, 2
      %s34 = scalar_select %p33, 0, %s32
      %s35 = sadd.s32 1, %s26
      %s36 = scalar_select %p33, %s35, %s26
      %p37 = scmp.ge.s32.totalorder %s36, 2
      %s38 = scalar_select %p37, 0, %s36
      %s39 = ssub.s32 %s26, %s38
      %s40 = ssub.s32 %s27, %s34
      %s41 = sor.u32 %s39, %s40
      %p42 = scmp.eq.s32.totalorder %s41, 0
      %s44 = sadd.s32 %s43, 1
      %s45 = scalar_select %p42, %s43, %s44
      %p48 = pneg %p42
      %p49 = scmp.eq.s32.totalorder %s19, 3
      %p50 = por %p48, %p49
      %p51 = scmp.ne.s32.totalorder %s43, %s46
      %p52 = scmp.eq.s32.totalorder %s19, 0
      %p53 = por %p51, %p52
      %p54 = scmp.ne.s32.totalorder %s43, %s46
      %p55 = scmp.eq.s32.totalorder %s24, 3
      %p56 = por %p54, %p55
      %p57 = scmp.ne.s32.totalorder %s46, %s47
      %p58 = scmp.eq.s32.totalorder %s24, 0
      %p59 = por %p57, %p58
      %p60 = scmp.ne.s32.totalorder %s46, %s47
      %p61 = scmp.eq.s32.totalorder %s25, 3
      %p62 = por %p60, %p61
      %p64 = scmp.ne.s32.totalorder %s47, %s63
      %p65 = scmp.eq.s32.totalorder %s25, 0
      %p66 = por %p64, %p65
      %s68 = sadd.s32 %s67, 1
      %p71 = scmp.eq.s32.totalorder %s19, 3
      %p72 = scmp.ne.s32.totalorder %s67, %s69
      %p73 = scmp.eq.s32.totalorder %s19, 0
      %p74 = por %p72, %p73
      %p75 = scmp.ne.s32.totalorder %s67, %s69
      %p76 = scmp.eq.s32.totalorder %s24, 3
      %p77 = por %p75, %p76
      %p78 = scmp.ne.s32.totalorder %s69, %s70
      %p79 = scmp.eq.s32.totalorder %s24, 0
      %p80 = por %p78, %p79
      %p81 = scmp.ne.s32.totalorder %s69, %s70
      %p82 = scmp.eq.s32.totalorder %s25, 3
      %p83 = por %p81, %p82
      %p85 = scmp.ne.s32.totalorder %s70, %s84
      %p86 = scmp.eq.s32.totalorder %s25, 0
      %p87 = por %p85, %p86
      %s89 = sadd.s32 %s88, 1
      %p92 = scmp.eq.s32.totalorder %s19, 3
      %p93 = scmp.ne.s32.totalorder %s88, %s90
      %p94 = scmp.eq.s32.totalorder %s19, 0
      %p95 = por %p93, %p94
      %p96 = scmp.ne.s32.totalorder %s88, %s90
      %p97 = scmp.eq.s32.totalorder %s24, 3
      %p98 = por %p96, %p97
      %p99 = scmp.ne.s32.totalorder %s90, %s91
      %p100 = scmp.eq.s32.totalorder %s24, 0
      %p101 = por %p99, %p100
      %p102 = scmp.ne.s32.totalorder %s90, %s91
      %p103 = scmp.eq.s32.totalorder %s25, 3
      %p104 = por %p102, %p103
      %p106 = scmp.ne.s32.totalorder %s91, %s105
      %p107 = scmp.eq.s32.totalorder %s25, 0
      %p108 = por %p106, %p107
      %s110 = sadd.s32 %s109, 1
      %p113 = scmp.eq.s32.totalorder %s19, 3
      %p114 = scmp.ne.s32.totalorder %s109, %s111
      %p115 = scmp.eq.s32.totalorder %s19, 0
      %p116 = por %p114, %p115
      %p117 = scmp.ne.s32.totalorder %s109, %s111
      %p118 = scmp.eq.s32.totalorder %s24, 3
      %p119 = por %p117, %p118
      %p120 = scmp.ne.s32.totalorder %s111, %s112
      %p121 = scmp.eq.s32.totalorder %s24, 0
      %p122 = por %p120, %p121
      %p123 = scmp.ne.s32.totalorder %s111, %s112
      %p124 = scmp.eq.s32.totalorder %s25, 3
      %p125 = por %p123, %p124
      %p127 = scmp.ne.s32.totalorder %s112, %s126
      %p128 = scmp.eq.s32.totalorder %s25, 0
      %p129 = por %p127, %p128
      %s131 = sadd.s32 %s130, 1
      %p134 = scmp.eq.s32.totalorder %s19, 3
      %p135 = scmp.ne.s32.totalorder %s130, %s132
      %p136 = scmp.eq.s32.totalorder %s19, 0
      %p137 = por %p135, %p136
      %p138 = scmp.ne.s32.totalorder %s130, %s132
      %p139 = scmp.eq.s32.totalorder %s24, 3
      %p140 = por %p138, %p139
      %p141 = scmp.ne.s32.totalorder %s132, %s133
      %p142 = scmp.eq.s32.totalorder %s24, 0
      %p143 = por %p141, %p142
      %p144 = scmp.ne.s32.totalorder %s132, %s133
      %p145 = scmp.eq.s32.totalorder %s25, 3
      %p146 = por %p144, %p145
      %p148 = scmp.ne.s32.totalorder %s133, %s147
      %p149 = scmp.eq.s32.totalorder %s25, 0
      %p150 = por %p148, %p149
      %s151 = ssub.s32 %s26, %s38
      %s152 = ssub.s32 %s27, %s34
      %s153 = sor.u32 %s151, %s152
      %p154 = scmp.eq.s32.totalorder %s153, 0
      %s156 = sadd.s32 %s155, 1
      %s157 = scalar_select %p154, %s155, %s156
      %p160 = pneg %p154
      %p161 = scmp.eq.s32.totalorder %s19, 3
      %p162 = por %p160, %p161
      %p163 = scmp.ne.s32.totalorder %s155, %s158
      %p164 = scmp.eq.s32.totalorder %s19, 0
      %p165 = por %p163, %p164
      %p166 = scmp.ne.s32.totalorder %s155, %s158
      %p167 = scmp.eq.s32.totalorder %s24, 3
      %p168 = por %p166, %p167
      %p169 = scmp.ne.s32.totalorder %s158, %s159
      %p170 = scmp.eq.s32.totalorder %s24, 0
      %p171 = por %p169, %p170
      %p172 = scmp.ne.s32.totalorder %s158, %s159
      %p173 = scmp.eq.s32.totalorder %s25, 3
      %p174 = por %p172, %p173
      %p176 = scmp.ne.s32.totalorder %s159, %s175
      %p177 = scmp.eq.s32.totalorder %s25, 0
      %p178 = por %p176, %p177
      %s179 = ssub.s32 %s26, %s38
      %p180 = scmp.eq.s32.totalorder %s179, 0
      %s182 = sadd.s32 %s181, 1
      %s183 = scalar_select %p180, %s181, %s182
      %p186 = pneg %p180
      %p187 = scmp.eq.s32.totalorder %s19, 3
      %p188 = por %p186, %p187
      %p189 = scmp.ne.s32.totalorder %s181, %s184
      %p190 = scmp.eq.s32.totalorder %s19, 0
      %p191 = por %p189, %p190
      %p192 = scmp.ne.s32.totalorder %s181, %s184
      %p193 = scmp.eq.s32.totalorder %s24, 3
      %p194 = por %p192, %p193
      %p195 = scmp.ne.s32.totalorder %s184, %s185
      %p196 = scmp.eq.s32.totalorder %s24, 0
      %p197 = por %p195, %p196
      %p198 = scmp.ne.s32.totalorder %s184, %s185
      %p199 = scmp.eq.s32.totalorder %s25, 3
      %p200 = por %p198, %p199
      %p202 = scmp.ne.s32.totalorder %s185, %s201
      %p203 = scmp.eq.s32.totalorder %s25, 0
      %p204 = por %p202, %p203
      %p205 = scmp.le.s32.totalorder 1, %s19
      %p206 = scmp.lt.s32.totalorder %s19, 5
      %p207 = pnand %p205, %p206
      %p208 = pneg %p207
      // Predicated region
      $region9: #{tpu_custom_call.1} parent=5 // pred_check
        _
      $region10: #{tpu_custom_call.1} parent=5 // pred_check_branch
        %210 = sbr.rel (%p207) target = $region12
      $region11: #{tpu_custom_call.1} parent=5 // pred_region
        %s211 = ssub.s32 %s19, 1
        // Predicated region
        $region13: #{tpu_custom_call.1} parent=11 // pred_check
          %p212 = pneg %p80
        $region14: #{tpu_custom_call.1} parent=11 // pred_check_branch
          %214 = sbr.rel (%p212) target = $region16
        $region15: #{tpu_custom_call.1} parent=11 // pred_region
          _
        $region16: #{tpu_custom_call.1} parent=11 // pred_fallthru
          _
        // Predicated region
        $region17: #{tpu_custom_call.1} parent=11 // pred_check
          %p215 = pneg %p101
        $region18: #{tpu_custom_call.1} parent=11 // pred_check_branch
          %217 = sbr.rel (%p215) target = $region20
        $region19: #{tpu_custom_call.1} parent=11 // pred_region
          _
        $region20: #{tpu_custom_call.1} parent=11 // pred_fallthru
          _
        // Predicated region
        $region21: #{tpu_custom_call.1} parent=11 // pred_check
          %p218 = pneg %p122
        $region22: #{tpu_custom_call.1} parent=11 // pred_check_branch
          %220 = sbr.rel (%p218) target = $region24
        $region23: #{tpu_custom_call.1} parent=11 // pred_region
          _
        $region24: #{tpu_custom_call.1} parent=11 // pred_fallthru
          _
        // Predicated region
        $region25: #{tpu_custom_call.1} parent=11 // pred_check
          %p221 = pneg %p143
        $region26: #{tpu_custom_call.1} parent=11 // pred_check_branch
          %223 = sbr.rel (%p221) target = $region28
        $region27: #{tpu_custom_call.1} parent=11 // pred_region
          _
        $region28: #{tpu_custom_call.1} parent=11 // pred_fallthru
          _
      $region12: #{tpu_custom_call.1} parent=5 // pred_fallthru
        _
      %p224 = scmp.lt.s32.totalorder %s19, 4
      // Predicated region
      $region29: #{tpu_custom_call.1} parent=5 // pred_check
        %p225 = pneg %p224
      $region30: #{tpu_custom_call.1} parent=5 // pred_check_branch
        %227 = sbr.rel (%p225) target = $region32
      $region31: #{tpu_custom_call.1} parent=5 // pred_region
        // Predicated region
        $region33: #{tpu_custom_call.1} parent=31 // pred_check
          %p228 = pneg %p53
        $region34: #{tpu_custom_call.1} parent=31 // pred_check_branch
          %230 = sbr.rel (%p228) target = $region36
        $region35: #{tpu_custom_call.1} parent=31 // pred_region
          %p231 = scmp.lt.s32.totalorder %s26, 1
          %s232 = scalar_select %p231, %s26, 1
          %p233 = scmp.lt.s32.totalorder %s27, 1
          %s234 = scalar_select %p233, %s27, 1
          %s235 = smul.addr %s232, 2
          %s236 = sadd.s32 %s234, %s235
          %s237 = smul.addr %s236, 4
          %s238 = scalar_lea.vmem %s0, %s237
        $region36: #{tpu_custom_call.1} parent=31 // pred_fallthru
          _
      $region32: #{tpu_custom_call.1} parent=5 // pred_fallthru
        _
      %p239 = scmp.le.s32.totalorder 1, %s19
      %p240 = scmp.lt.s32.totalorder %s19, 5
      %p241 = pnand %p239, %p240
      %p242 = pneg %p241
      // Predicated region
      $region37: #{tpu_custom_call.1} parent=5 // pred_check
        _
      $region38: #{tpu_custom_call.1} parent=5 // pred_check_branch
        %244 = sbr.rel (%p241) target = $region40
      $region39: #{tpu_custom_call.1} parent=5 // pred_region
        %s245 = ssub.s32 %s19, 1
        %p246 = scmp.lt.s32.totalorder %s28, 1
        %s247 = scalar_select %p246, %s28, 1
        %p248 = scmp.lt.s32.totalorder %s29, 1
        %s249 = scalar_select %p248, %s29, 1
        %s250 = smul.addr %s247, 2
        %s251 = sadd.s32 %s249, %s250
        %s252 = smul.addr %s251, 4
        %s253 = scalar_lea.vmem %s0, %s252
        %p254 = pneg %p59
        %p255 = pneg %p56
        %p256 = pneg %p80
        %p257 = pneg %p77
        %p258 = pneg %p101
        %p259 = pneg %p98
        %p260 = pneg %p122
        %p261 = pneg %p119
        %p262 = pneg %p143
        %p263 = pneg %p140
        %p264 = pneg %p171
        %p265 = pneg %p168
        %s266 = sand.u32 %s158, 1
        %s267 = scalar_lea.sflag [#allocation4], %s266
        %s268 = sand.u32 %s158, 1
        %s269 = smul.addr %s268, 32
        %s270 = scalar_lea.vmem [#allocation3], %s269
        %p271 = pneg %p197
        %p272 = pneg %p194
        %s273 = sand.u32 %s184, 1
        %s274 = scalar_lea.sflag [#allocation6], %s273
        %s275 = sand.u32 %s184, 1
        %s276 = scalar_lea.vmem [#allocation5], %s275
        %p277 = scmp.lt.s32.totalorder %s28, 1
        %s278 = scalar_select %p277, %s28, 1
        %p279 = scmp.lt.s32.totalorder %s29, 1
        %s280 = scalar_select %p279, %s29, 1
        %s281 = smul.addr %s278, 2
        %s282 = sadd.s32 %s280, %s281
        %s283 = smul.addr %s282, 4
        %s284 = scalar_lea.vmem %s0, %s283
        %p285 = scmp.eq.s32.totalorder %s29, 0
        // Predicated region
        $region41: #{tpu_custom_call.1} parent=39 // pred_check
          %p286 = pneg %p285
        $region42: #{tpu_custom_call.1} parent=39 // pred_check_branch
          %288 = sbr.rel (%p286) target = $region44
        $region43: #{tpu_custom_call.1} parent=39 // pred_region
          %vm289 = vcmask 7168
          %290 = vst.msk [vmem:[#allocation2] sm:$0xff] %vm289, 0.0
          %291 = vst.msk [vmem:[#allocation2 + $0x8] sm:$0xff] %vm289, 0.0
          %292 = vst.msk [vmem:[#allocation2 + $0x10] sm:$0xff] %vm289, 0.0
          %293 = vst.msk [vmem:[#allocation2 + $0x18] sm:$0xff] %vm289, 0.0
        $region44: #{tpu_custom_call.1} parent=39 // pred_fallthru
          _
        %v294 = vld [vmem:[%s284] sm:$0xf]
        %v295 = vld [vmem:[%s1] sm:$0xff]
        %v296 = vld [vmem:[%s1 + $0x8] sm:$0xff]
        %v297 = vld [vmem:[%s1 + $0x10] sm:$0xff]
        %v298 = vld [vmem:[%s1 + $0x18] sm:$0xff]
        %v299 = vld [vmem:[%s2] sm:$0xff]
        %v300 = vld [vmem:[%s2 + $0x8] sm:$0xff]
        %v301 = vld [vmem:[%s2 + $0x10] sm:$0xff]
        %v302 = vld [vmem:[%s2 + $0x18] sm:$0xff]
        %304 = vset.pattern.permute.xlu0 0
        %305 = vperm.xlu0 %304, %v299
        %v306 = vpop.permute.xlu0 %305
        %309 = vset.pattern.permute.xlu0 0
        %310 = vperm.xlu0 %309, %v300
        %v311 = vpop.permute.xlu0 %310
        %314 = vset.pattern.permute.xlu0 0
        %315 = vperm.xlu0 %314, %v301
        %v316 = vpop.permute.xlu0 %315
        %319 = vset.pattern.permute.xlu0 0
        %320 = vperm.xlu0 %319, %v302
        %v321 = vpop.permute.xlu0 %320
        %vm323 = vcmask 31744
        %v325 = vsel %vm323, %v295, 0
        %v328 = vsel %vm323, %v296, 0
        %v331 = vsel %vm323, %v297, 0
        %v334 = vsel %vm323, %v298, 0
        %vm336 = vcmask 1043456
        %v338 = vsel %vm336, %v294, 0
        %340 = vmatprep.subr.mxu0 0.0
        %341 = vmatpush1.msra.mxu0 %v338
        %342 = vmatprep.subr.mxu0 0.0
        %343 = vmatpush1.msra.mxu0 0.0
        %344 = vmatprep.subr.mxu0 0.0
        %345 = vmatpush1.msra.mxu0 0.0
        %346 = vmatprep.subr.mxu0 0.0
        %347 = vmatpush1.msra.mxu0 0.0
        %348 = vmatprep.subr.mxu0 0.0
        %349 = vmatpush1.msra.mxu0 0.0
        %350 = vmatprep.subr.mxu0 0.0
        %351 = vmatpush1.msra.mxu0 0.0
        %352 = vmatprep.subr.mxu0 0.0
        %353 = vmatpush1.msra.mxu0 0.0
        %354 = vmatprep.subr.mxu0 0.0
        %355 = vmatpush1.msra.mxu0 0.0
        %356 = vmatprep.subr.mxu0 0.0
        %357 = vmatpush1.msra.mxu0 0.0
        %358 = vmatprep.subr.mxu0 0.0
        %359 = vmatpush1.msra.mxu0 0.0
        %360 = vmatprep.subr.mxu0 0.0
        %361 = vmatpush1.msra.mxu0 0.0
        %362 = vmatprep.subr.mxu0 0.0
        %363 = vmatpush1.msra.mxu0 0.0
        %364 = vmatprep.subr.mxu0 0.0
        %365 = vmatpush1.msra.mxu0 0.0
        %366 = vmatprep.subr.mxu0 0.0
        %367 = vmatpush1.msra.mxu0 0.0
        %368 = vmatprep.subr.mxu0 0.0
        %369 = vmatpush1.msra.mxu0 0.0
        %370 = vmatprep.subr.mxu0 0.0
        %371 = vmatpush1.msra.mxu0 0.0
        %372 = vmatprep.subr.mxu0 0.0
        %373 = vmatpush1.msra.mxu0 0.0
        %374 = vmatprep.subr.mxu0 0.0
        %375 = vmatpush1.msra.mxu0 0.0
        %376 = vmatprep.subr.mxu0 0.0
        %377 = vmatpush1.msra.mxu0 0.0
        %378 = vmatprep.subr.mxu0 0.0
        %379 = vmatpush1.msra.mxu0 0.0
        %380 = vmatprep.subr.mxu0 0.0
        %381 = vmatpush1.msra.mxu0 0.0
        %382 = vmatprep.subr.mxu0 0.0
        %383 = vmatpush1.msra.mxu0 0.0
        %384 = vmatprep.subr.mxu0 0.0
        %385 = vmatpush1.msra.mxu0 0.0
        %386 = vmatprep.subr.mxu0 0.0
        %387 = vmatpush1.msra.mxu0 0.0
        %388 = vmatprep.subr.mxu0 0.0
        %389 = vmatpush1.msra.mxu0 0.0
        %390 = vmatprep.subr.mxu0 0.0
        %391 = vmatpush1.msra.mxu0 0.0
        %392 = vmatprep.subr.mxu0 0.0
        %393 = vmatpush1.msra.mxu0 0.0
        %394 = vmatprep.subr.mxu0 0.0
        %395 = vmatpush1.msra.mxu0 0.0
        %396 = vmatprep.subr.mxu0 0.0
        %397 = vmatpush1.msra.mxu0 0.0
        %398 = vmatprep.subr.mxu0 0.0
        %399 = vmatpush1.msra.mxu0 0.0
        %400 = vmatprep.subr.mxu0 0.0
        %401 = vmatpush1.msra.mxu0 0.0
        %402 = vmatprep.subr.mxu0 0.0
        %403 = vmatpush1.msra.mxu0 0.0
        %404 = vmatprep.mubr.f32.mxu0 0.0
        %405 = vmatmul.mubr.f32.gmra.mrb[0].mxu0 %v325
        %v406 = vpop.f32.mrb[0].mxu0
        %v407 = vadd.f32 %v306, %v406
        %v408 = vpop.f32.mrb[0].mxu0
        %409 = vmatprep.mubr.f32.mxu0 0.0
        %410 = vmatmul.mubr.f32.gmra.mrb[0].mxu0 %v328
        %v411 = vpop.f32.mrb[0].mxu0
        %v412 = vadd.f32 %v311, %v411
        %v413 = vpop.f32.mrb[0].mxu0
        %414 = vmatprep.mubr.f32.mxu0 0.0
        %415 = vmatmul.mubr.f32.gmra.mrb[0].mxu0 %v331
        %v416 = vpop.f32.mrb[0].mxu0
        %v417 = vadd.f32 %v316, %v416
        %v418 = vpop.f32.mrb[0].mxu0
        %419 = vmatprep.mubr.f32.mxu0 0.0
        %420 = vmatmul.mubr.f32.gmra.mrb[0].mxu0 %v334
        %v421 = vpop.f32.mrb[0].mxu0
        %v422 = vadd.f32 %v321, %v421
        %v423 = vpop.f32.mrb[0].mxu0
        %424 = vdwg.mxu0
        %v425 = vmax.f32 %v407, 0.0
        %v426 = vmax.f32 %v412, 0.0
        %v427 = vmax.f32 %v417, 0.0
        %v428 = vmax.f32 %v422, 0.0
        %429 = vst [vmem:[%s270] sm:$0xff] %v425
        %430 = vst [vmem:[%s270 + $0x8] sm:$0xff] %v426
        %431 = vst [vmem:[%s270 + $0x10] sm:$0xff] %v427
        %432 = vst [vmem:[%s270 + $0x18] sm:$0xff] %v428
        %v433 = vld [vmem:[#allocation2] sm:$0xff]
        %v434 = vld [vmem:[#allocation2 + $0x8] sm:$0xff]
        %v435 = vld [vmem:[#allocation2 + $0x10] sm:$0xff]
        %v436 = vld [vmem:[#allocation2 + $0x18] sm:$0xff]
        %437 = vadd.xlane.f32.xlu0 %v425
        %v438 = vpop.xlane.xlu0 %437
        %439 = vadd.xlane.f32.xlu0 %v426
        %v440 = vpop.xlane.xlu0 %439
        %441 = vadd.xlane.f32.xlu0 %v427
        %v442 = vpop.xlane.xlu0 %441
        %443 = vadd.xlane.f32.xlu0 %v428
        %v444 = vpop.xlane.xlu0 %443
        %v445 = vadd.f32 %v433, %v438
        %v446 = vadd.f32 %v434, %v440
        %v447 = vadd.f32 %v435, %v442
        %v448 = vadd.f32 %v436, %v444
        %vm449 = vcmask 7168
        %450 = vst.msk [vmem:[#allocation2] sm:$0xff] %vm449, %v445
        %451 = vst.msk [vmem:[#allocation2 + $0x8] sm:$0xff] %vm449, %v446
        %452 = vst.msk [vmem:[#allocation2 + $0x10] sm:$0xff] %vm449, %v447
        %453 = vst.msk [vmem:[#allocation2 + $0x18] sm:$0xff] %vm449, %v448
        %p454 = scmp.eq.s32.totalorder %s29, 1
        // Predicated region
        $region45: #{tpu_custom_call.1} parent=39 // pred_check
          %p455 = pneg %p454
        $region46: #{tpu_custom_call.1} parent=39 // pred_check_branch
          %457 = sbr.rel (%p455) target = $region48
        $region47: #{tpu_custom_call.1} parent=39 // pred_region
          %v458 = vld [vmem:[#allocation2] sm:$0xff]
          %v459 = vld [vmem:[#allocation2 + $0x8] sm:$0xff]
          %v460 = vld [vmem:[#allocation2 + $0x10] sm:$0xff]
          %v461 = vld [vmem:[#allocation2 + $0x18] sm:$0xff]
          %v462 = vmul.f32 %v458, 0.00390625
          %v463 = vmul.f32 %v459, 0.00390625
          %v464 = vmul.f32 %v460, 0.00390625
          %v465 = vmul.f32 %v461, 0.00390625
          %v466 = vld [vmem:[%s3] sm:$0xff]
          %v467 = vld [vmem:[%s3 + $0x8] sm:$0xff]
          %v468 = vld [vmem:[%s3 + $0x10] sm:$0xff]
          %v469 = vld [vmem:[%s3 + $0x18] sm:$0xff]
          %471 = vset.pattern.permute.xlu0 0
          %472 = vperm.xlu0 %471, %v462
          %v473 = vpop.permute.xlu0 %472
          %476 = vset.pattern.permute.xlu0 0
          %477 = vperm.xlu0 %476, %v463
          %v478 = vpop.permute.xlu0 %477
          %481 = vset.pattern.permute.xlu0 0
          %482 = vperm.xlu0 %481, %v464
          %v483 = vpop.permute.xlu0 %482
          %486 = vset.pattern.permute.xlu0 0
          %487 = vperm.xlu0 %486, %v465
          %v488 = vpop.permute.xlu0 %487
          %v490 = vmul.f32 %v473, %v466
          %v491 = vmul.f32 %v478, %v467
          %v492 = vmul.f32 %v483, %v468
          %v493 = vmul.f32 %v488, %v469
          %vm494 = vcmask 64512
          %v495 = vsel %vm494, %v490, 0.0
          %v496 = vsel %vm494, %v491, 0.0
          %v497 = vadd.f32 %v495, %v496
          %v498 = vsel %vm494, %v492, 0.0
          %v499 = vadd.f32 %v497, %v498
          %v500 = vsel %vm494, %v493, 0.0
          %v501 = vadd.f32 %v499, %v500
          %v502 = vrot.slane %v501, 4
          %v503 = vadd.f32 %v501, %v502
          %v504 = vrot.slane %v503, 2
          %v505 = vadd.f32 %v503, %v504
          %v506 = vrot.slane %v505, 1
          %v507 = vadd.f32 %v505, %v506
          %v508 = vld [vmem:[%s4] sm:$0x1]
          %v509 = vadd.f32 %v507, %v508
          %vm510 = vcmask 57344
          %511 = vst.msk [vmem:[%s276] sm:$0x1] %vm510, %v509
        $region48: #{tpu_custom_call.1} parent=39 // pred_fallthru
          _
        %s512 = sand.u32 %s158, 1
        %s513 = scalar_lea.sflag [#allocation4], %s512
        %s514 = sand.u32 %s158, 1
        %s515 = smul.addr %s514, 32
        %s516 = scalar_lea.vmem [#allocation3], %s515
        %s517 = sand.u32 %s184, 1
        %s518 = scalar_lea.sflag [#allocation6], %s517
        %s519 = sand.u32 %s184, 1
        %s520 = scalar_lea.vmem [#allocation5], %s519
        // Predicated region
        $region49: #{tpu_custom_call.1} parent=39 // pred_check
          %p521 = pneg %p168
        $region50: #{tpu_custom_call.1} parent=39 // pred_check_branch
          %523 = sbr.rel (%p521) target = $region52
        $region51: #{tpu_custom_call.1} parent=39 // pred_region
          %s525 = ssub.s32 512, 512
          %526 = vsyncadd %s513, %s525
          %s527 = smul.addr %s28, 8
          %s528 = sadd.s32 %s29, %s527
          %s529 = smul.addr %s528, 128
          %s530 = scalar_lea.hbm %s5, %s529
          %s531 = sshll.u32 %s516, 4
          %s532 = int_to_ptr.vmem [resolvable:$true] %s531
          %537 = dma.vmem_to_hbm [thread:$0]  %s532, 512, %s530, %s513, 128, 256, 8
        $region52: #{tpu_custom_call.1} parent=39 // pred_fallthru
          _
        // Predicated region
        $region53: #{tpu_custom_call.1} parent=39 // pred_check
          %p538 = pneg %p194
        $region54: #{tpu_custom_call.1} parent=39 // pred_check_branch
          %540 = sbr.rel (%p538) target = $region56
        $region55: #{tpu_custom_call.1} parent=39 // pred_region
          %s542 = ssub.s32 16, 16
          %543 = vsyncadd %s518, %s542
          %s544 = smul.addr %s28, 16
          %s545 = scalar_lea.hbm %s6, %s544
          %s547 = sshll.u32 %s520, 4
          %s548 = int_to_ptr.vmem [resolvable:$true] %s547
          %550 = dma.vmem_to_hbm [thread:$0]  %s548, 16, %s545, %s518
        $region56: #{tpu_custom_call.1} parent=39 // pred_fallthru
          _
      $region40: #{tpu_custom_call.1} parent=5 // pred_fallthru
        _
      %p551 = scmp.le.s32.totalorder 2, %s19
      // Predicated region
      $region57: #{tpu_custom_call.1} parent=5 // pred_check
        %p552 = pneg %p551
      $region58: #{tpu_custom_call.1} parent=5 // pred_check_branch
        %554 = sbr.rel (%p552) target = $region60
      $region59: #{tpu_custom_call.1} parent=5 // pred_region
        %s555 = ssub.s32 %s19, 2
        // Predicated region
        $region61: #{tpu_custom_call.1} parent=59 // pred_check
          %p556 = pneg %p174
        $region62: #{tpu_custom_call.1} parent=59 // pred_check_branch
          %558 = sbr.rel (%p556) target = $region64
        $region63: #{tpu_custom_call.1} parent=59 // pred_region
          %s559 = sand.u32 %s159, 1
          %s560 = scalar_lea.sflag [#allocation4], %s559
          %s561 = sand.u32 %s159, 1
          %s562 = smul.addr %s561, 32
          %s563 = scalar_lea.vmem [#allocation3], %s562
          %564 = dma.done %s560, 512
        $region64: #{tpu_custom_call.1} parent=59 // pred_fallthru
          _
        // Predicated region
        $region65: #{tpu_custom_call.1} parent=59 // pred_check
          %p565 = pneg %p200
        $region66: #{tpu_custom_call.1} parent=59 // pred_check_branch
          %567 = sbr.rel (%p565) target = $region68
        $region67: #{tpu_custom_call.1} parent=59 // pred_region
          %s568 = sand.u32 %s185, 1
          %s569 = scalar_lea.sflag [#allocation6], %s568
          %s570 = sand.u32 %s185, 1
          %s571 = scalar_lea.vmem [#allocation5], %s570
          %572 = dma.done %s569, 16
        $region68: #{tpu_custom_call.1} parent=59 // pred_fallthru
          _
      $region60: #{tpu_custom_call.1} parent=5 // pred_fallthru
        _
    $region6: #{tpu_custom_call.1} parent=1 // loop_footer
      %s23 = sadd.s32 1, %s19
    $region7: #{tpu_custom_call.1} parent=1 // loop_footer_branch
      %18 = sbr.rel target = $region3
    $region8: #{tpu_custom_call.1} parent=1 // loop_exit
      _
    %573 = vsyncpa [#allocation4], 1
    %s574 = scalar_lea.sflag [#allocation4], 1
    %575 = vsyncpa %s574, 1
    %576 = vsyncpa [#allocation6], 1
    %s577 = scalar_lea.sflag [#allocation6], 1
    %578 = vsyncpa %s577, 1

</llo_original>
